<compile_context>
chip_gen: v6e
topology: v6e:2x2x1
jax: 0.10.0
libtpu: 0.0.40
codegen_flags: <defaults>
</compile_context>

<pallas_src>
import jax
import jax.numpy as jnp
from jax.experimental import pallas as pl
from jax.experimental.pallas import tpu as pltpu


def _round_up(n, m):
    return ((n + m - 1) // m) * m


def _cdiv(a, b):
    return (a + b - 1) // b


def _choose_batch_tiling(B, tile_b):
    """Pick (bp, bp_tile, nb) with bp = nb * bp_tile >= B, bp_tile % 128 == 0."""
    # Round the requested tile to the lane width and keep it VMEM-safe on v7x (64 MiB
    # physical, 32 MiB scoped limit below): TB <= 8192 keeps h1/h2 intermediates < 8 MiB.
    tile_b = min(max(128, _round_up(tile_b, 128)), 8192)
    bp_min = _round_up(B, 128)                    # lane-padded batch
    nb = max(1, _cdiv(bp_min, tile_b))
    # Ensure >= 2 grid steps when there is enough work so the "parallel" axis can
    # actually shard across both TensorCores on v7x megacore.
    if nb == 1 and bp_min >= 256:
        nb = 2
    bp_tile = _round_up(_cdiv(bp_min, nb), 128)   # minimize last-tile padding
    bp = nb * bp_tile
    return bp, bp_tile, nb


def _mlp_kernel(x_ref, w1_ref, b1_ref, w2_ref, b2_ref, w3_ref, b3_ref, o_ref):
    # Layout: batch on the lane axis.
    #   x_ref : (din, TB)     w1_ref: (Hp, din)    b1_ref: (Hp, 1)
    #   w2_ref: (Hp, Hp)      b2_ref: (Hp, 1)
    #   w3_ref: (Hp, out)     b3_ref: (out, 1)     o_ref : (out, TB)
    x = x_ref[...]
    w1 = w1_ref[...]

    if w1.shape[1] == 1:
        # fc1 with K=1: a systolic MXU pass would do one multiply per element; use a
        # VPU broadcast-multiply instead (co-issues with the fc2 MXU work).
        h1 = w1 * x                                   # (Hp,1)*(1,TB) -> (Hp,TB)
    else:
        h1 = jnp.dot(w1, x, preferred_element_type=jnp.float32)
    h1 = jnp.maximum(h1 + b1_ref[...], 0.0)

    # fc2: dense MXU matmul, f32 accumulate.
    h2 = jnp.dot(w2_ref[...], h1, preferred_element_type=jnp.float32) + b2_ref[...]
    h2 = jnp.maximum(h2, 0.0)

    w3 = w3_ref[...]
    if w3.shape[1] == 1:
        # fc3 with out_dim=1: an M=1 MXU pass is ~1/256 utilized on v6e/v7x; do it as a
        # VPU broadcast-multiply + sublane (XLU) reduce instead — those slots are idle.
        o = jnp.sum(w3 * h2, axis=0, keepdims=True) + b3_ref[...]     # (1, TB)
    else:
        # General case: contract the hidden (sublane) axis, lane-dense (out, TB) result.
        o = jax.lax.dot_general(w3, h2, (((0,), (0,)), ((), ())),
                                preferred_element_type=jnp.float32) + b3_ref[...]
    o_ref[...] = o.astype(o_ref.dtype)


def pad_params(params):
    """Pad / re-layout PyTorch-layout params ONCE (outside the jitted per-call path).

    params: w*: (out_features, in_features), b*: (out_features,).
    Zero padding is numerically exact: ReLU(0)=0 and zero rows/cols contribute nothing.
    """
    w1, b1 = params["w1"], params["b1"]
    w2, b2 = params["w2"], params["b2"]
    w3, b3 = params["w3"], params["b3"]
    hidden, din = w1.shape
    out_dim = w3.shape[0]
    hp = _round_up(hidden, 128)                       # hidden -> sublane/MXU friendly
    f32 = jnp.float32

    w1p = jnp.zeros((hp, din), f32).at[:hidden, :].set(w1.astype(f32))
    b1p = jnp.zeros((hp, 1), f32).at[:hidden, 0].set(b1.astype(f32))
    w2p = jnp.zeros((hp, hp), f32).at[:hidden, :hidden].set(w2.astype(f32))
    b2p = jnp.zeros((hp, 1), f32).at[:hidden, 0].set(b2.astype(f32))
    w3t = jnp.zeros((hp, out_dim), f32).at[:hidden, :].set(w3.astype(f32).T)
    b3p = b3.reshape(out_dim, 1).astype(f32)
    return {"w1": w1p, "b1": b1p, "w2": w2p, "b2": b2p, "w3t": w3t, "b3": b3p}


def simple_nn_forward(x, padded_params, *, tile_b=4096):
    """Forward pass of SimpleNN on pre-padded params (see pad_params).

    x: (B, input_dim) float32.  Returns (B, output_dim) float32.
    """
    w1p, b1p = padded_params["w1"], padded_params["b1"]
    w2p, b2p = padded_params["w2"], padded_params["b2"]
    w3t, b3p = padded_params["w3t"], padded_params["b3"]

    B, din = x.shape
    hp = w1p.shape[0]
    out_dim = w3t.shape[1]

    bp, bp_tile, nb = _choose_batch_tiling(B, tile_b)

    f32 = jnp.float32
    # Batch goes on the lane axis; zero-padded columns produce garbage that is sliced off.
    xt = jnp.zeros((din, bp), f32).at[:, :B].set(x.astype(f32).T)

    flops = 2 * bp * (din * hp + hp * hp + hp * out_dim)
    bytes_accessed = 4 * (xt.size + w1p.size + b1p.size + w2p.size + b2p.size
                          + w3t.size + b3p.size + out_dim * bp)

    resident = lambda shape: pl.BlockSpec(shape, lambda i: (0, 0))    # stays in VMEM

    out_t = pl.pallas_call(
        _mlp_kernel,
        out_shape=jax.ShapeDtypeStruct((out_dim, bp), f32),
        grid=(nb,),
        in_specs=[
            pl.BlockSpec((din, bp_tile), lambda i: (0, i)),           # x tile (lane-dense)
            resident(w1p.shape),
            resident(b1p.shape),
            resident(w2p.shape),
            resident(b2p.shape),
            resident(w3t.shape),
            resident(b3p.shape),
        ],
        out_specs=pl.BlockSpec((out_dim, bp_tile), lambda i: (0, i)),  # lane-dense output
        compiler_params=pltpu.CompilerParams(
            dimension_semantics=("parallel",),                         # megacore on v7x
            vmem_limit_bytes=32 * 1024 * 1024,                         # safe on v7x 64 MiB
        ),
        cost_estimate=pl.CostEstimate(
            flops=flops, transcendentals=0, bytes_accessed=bytes_accessed),
    )(xt, w1p, b1p, w2p, b2p, w3t, b3p)

    return out_t[:, :B].T                                              # (B, out_dim)


def init_params(key, input_dim=1, hidden_dim=50, output_dim=1):
    """Deterministic init mimicking nn.Linear's uniform(-1/sqrt(fan_in), 1/sqrt(fan_in)).

    Weights in PyTorch layout: (out_features, in_features); biases (out_features,).
    """
    def linear_init(k, fan_in, fan_out):
        kw, kb = jax.random.split(k)
        bound = 1.0 / jnp.sqrt(float(fan_in))
        w = jax.random.uniform(kw, (fan_out, fan_in), jnp.float32, -bound, bound)
        b = jax.random.uniform(kb, (fan_out,), jnp.float32, -bound, bound)
        return w, b

    k1, k2, k3 = jax.random.split(key, 3)
    w1, b1 = linear_init(k1, input_dim, hidden_dim)
    w2, b2 = linear_init(k2, hidden_dim, hidden_dim)
    w3, b3 = linear_init(k3, hidden_dim, output_dim)
    return {"w1": w1, "b1": b1, "w2": w2, "b2": b2, "w3": w3, "b3": b3}


def _reference_forward(x, p):
    h1 = jnp.maximum(x @ p["w1"].T + p["b1"], 0.0)
    h2 = jnp.maximum(h1 @ p["w2"].T + p["b2"], 0.0)
    return h2 @ p["w3"].T + p["b3"]


if __name__ == "__main__":
    key = jax.random.PRNGKey(0)
    k_params, k_x1, k_x2 = jax.random.split(key, 3)

    input_dim, hidden_dim, output_dim = 1, 50, 1
    params = init_params(k_params, input_dim, hidden_dim, output_dim)
    padded = pad_params(params)            # padded once, outside the jitted call path

    fwd = jax.jit(simple_nn_forward)

    # Small batch (single grid step).
    x_small = jax.random.normal(k_x1, (8, input_dim), jnp.float32)
    out_small = jax.block_until_ready(fwd(x_small, padded))
    ref_small = _reference_forward(x_small, params)
    assert out_small.shape == (8, output_dim), out_small.shape
    assert jnp.allclose(out_small, ref_small, atol=1e-4, rtol=1e-4), \
        "Pallas output mismatch vs reference (small batch)"

    # Larger batch exercising the multi-tile / megacore path (nb >= 2, padded last tile).
    x_big = jax.random.normal(k_x2, (300, input_dim), jnp.float32)
    out_big = jax.block_until_ready(fwd(x_big, padded))
    ref_big = _reference_forward(x_big, params)
    assert out_big.shape == (300, output_dim), out_big.shape
    assert jnp.allclose(out_big, ref_big, atol=1e-4, rtol=1e-4), \
        "Pallas output mismatch vs reference (multi-tile batch)"

    print("KERNEL_OK")
</pallas_src>

<mosaic_0001>
module attributes {stable_mosaic.version = 11 : i64} {
  func.func @_mlp_kernel(%arg0: i32, %arg1: memref<1x128xf32, #tpu.memory_space<vmem>>, %arg2: memref<128x1xf32, #tpu.memory_space<vmem>>, %arg3: memref<128x1xf32, #tpu.memory_space<vmem>>, %arg4: memref<128x128xf32, #tpu.memory_space<vmem>>, %arg5: memref<128x1xf32, #tpu.memory_space<vmem>>, %arg6: memref<128x1xf32, #tpu.memory_space<vmem>>, %arg7: memref<1x1xf32, #tpu.memory_space<vmem>>, %arg8: memref<1x128xf32, #tpu.memory_space<vmem>>) attributes {dimension_semantics = [#tpu.dimension_semantics<parallel>], iteration_bounds = array<i64: 1>, scalar_prefetch = 0 : i64, scratch_operands = 0 : i64, tpu.core_type = #tpu.core_type<tc>, window_params = [{transform_indices = @transform_0, window_bounds = array<i64: 1, 128>}, {pipeline_mode = #tpu.pipeline_mode<synchronous>, transform_indices = @transform_1, window_bounds = array<i64: 128, 1>}, {pipeline_mode = #tpu.pipeline_mode<synchronous>, transform_indices = @transform_2, window_bounds = array<i64: 128, 1>}, {pipeline_mode = #tpu.pipeline_mode<synchronous>, transform_indices = @transform_3, window_bounds = array<i64: 128, 128>}, {pipeline_mode = #tpu.pipeline_mode<synchronous>, transform_indices = @transform_4, window_bounds = array<i64: 128, 1>}, {pipeline_mode = #tpu.pipeline_mode<synchronous>, transform_indices = @transform_5, window_bounds = array<i64: 128, 1>}, {pipeline_mode = #tpu.pipeline_mode<synchronous>, transform_indices = @transform_6, window_bounds = array<i64: 1, 1>}, {transform_indices = @transform_7, window_bounds = array<i64: 1, 128>}]} {
    %c0 = arith.constant 0 : index
    %c0_0 = arith.constant 0 : index
    %0 = vector.load %arg1[%c0, %c0_0] : memref<1x128xf32, #tpu.memory_space<vmem>>, vector<1x128xf32>
    %c0_1 = arith.constant 0 : index
    %c0_2 = arith.constant 0 : index
    %1 = vector.load %arg2[%c0_1, %c0_2] : memref<128x1xf32, #tpu.memory_space<vmem>>, vector<128x1xf32>
    %2 = vector.broadcast %1 : vector<128x1xf32> to vector<128x128xf32>
    %3 = vector.broadcast %0 : vector<1x128xf32> to vector<128x128xf32>
    %4 = arith.mulf %2, %3 : vector<128x128xf32>
    %c0_3 = arith.constant 0 : index
    %c0_4 = arith.constant 0 : index
    %5 = vector.load %arg3[%c0_3, %c0_4] : memref<128x1xf32, #tpu.memory_space<vmem>>, vector<128x1xf32>
    %6 = vector.broadcast %5 : vector<128x1xf32> to vector<128x128xf32>
    %7 = arith.addf %4, %6 : vector<128x128xf32>
    %cst = arith.constant 0.000000e+00 : f32
    %8 = vector.broadcast %cst : f32 to vector<128x128xf32>
    %9 = arith.maximumf %7, %8 : vector<128x128xf32>
    %c0_5 = arith.constant 0 : index
    %c0_6 = arith.constant 0 : index
    %10 = vector.load %arg4[%c0_5, %c0_6] : memref<128x128xf32, #tpu.memory_space<vmem>>, vector<128x128xf32>
    %cst_7 = arith.constant dense<0.000000e+00> : vector<128x128xf32>
    %11 = tpu.matmul %10, %9, %cst_7 {dimension_numbers = #tpu.dot_dimension_numbers<[1], [0], [0], [1], [0, 0, 1, 1], [], []>} : vector<128x128xf32>, vector<128x128xf32>, vector<128x128xf32> -> vector<128x128xf32>
    %c0_8 = arith.constant 0 : index
    %c0_9 = arith.constant 0 : index
    %12 = vector.load %arg5[%c0_8, %c0_9] : memref<128x1xf32, #tpu.memory_space<vmem>>, vector<128x1xf32>
    %13 = vector.broadcast %12 : vector<128x1xf32> to vector<128x128xf32>
    %14 = arith.addf %11, %13 : vector<128x128xf32>
    %cst_10 = arith.constant 0.000000e+00 : f32
    %15 = vector.broadcast %cst_10 : f32 to vector<128x128xf32>
    %16 = arith.maximumf %14, %15 : vector<128x128xf32>
    %c0_11 = arith.constant 0 : index
    %c0_12 = arith.constant 0 : index
    %17 = vector.load %arg6[%c0_11, %c0_12] : memref<128x1xf32, #tpu.memory_space<vmem>>, vector<128x1xf32>
    %18 = vector.broadcast %17 : vector<128x1xf32> to vector<128x128xf32>
    %19 = arith.mulf %18, %16 : vector<128x128xf32>
    %cst_13 = arith.constant dense<0.000000e+00> : vector<128xf32>
    %20 = vector.multi_reduction <add>, %19, %cst_13 [0] : vector<128x128xf32> to vector<128xf32>
    %21 = vector.shape_cast %20 : vector<128xf32> to vector<1x128xf32>
    %c0_14 = arith.constant 0 : index
    %c0_15 = arith.constant 0 : index
    %22 = vector.load %arg7[%c0_14, %c0_15] : memref<1x1xf32, #tpu.memory_space<vmem>>, vector<1x1xf32>
    %23 = vector.broadcast %22 : vector<1x1xf32> to vector<1x128xf32>
    %24 = arith.addf %21, %23 : vector<1x128xf32>
    %c0_16 = arith.constant 0 : index
    %c0_17 = arith.constant 0 : index
    %25 = vector.load %arg8[%c0_16, %c0_17] : memref<1x128xf32, #tpu.memory_space<vmem>>, vector<1x128xf32>
    tpu.vector_store %arg8[%c0_16, %c0_17], %24 {strides = array<i32>} : memref<1x128xf32, #tpu.memory_space<vmem>>, vector<1x128xf32>,
    return
  }
  func.func @transform_0(%arg0: i32) -> (i32, i32) {
    %c0_i32 = arith.constant 0 : i32
    %c0_i32_0 = arith.constant 0 : i32
    return %c0_i32, %arg0 : i32, i32
  }
  func.func @transform_1(%arg0: i32) -> (i32, i32) {
    %c0_i32 = arith.constant 0 : i32
    %c0_i32_0 = arith.constant 0 : i32
    %c0_i32_1 = arith.constant 0 : i32
    return %c0_i32, %c0_i32_0 : i32, i32
  }
  func.func @transform_2(%arg0: i32) -> (i32, i32) {
    %c0_i32 = arith.constant 0 : i32
    %c0_i32_0 = arith.constant 0 : i32
    %c0_i32_1 = arith.constant 0 : i32
    return %c0_i32, %c0_i32_0 : i32, i32
  }
  func.func @transform_3(%arg0: i32) -> (i32, i32) {
    %c0_i32 = arith.constant 0 : i32
    %c0_i32_0 = arith.constant 0 : i32
    %c0_i32_1 = arith.constant 0 : i32
    return %c0_i32, %c0_i32_0 : i32, i32
  }
  func.func @transform_4(%arg0: i32) -> (i32, i32) {
    %c0_i32 = arith.constant 0 : i32
    %c0_i32_0 = arith.constant 0 : i32
    %c0_i32_1 = arith.constant 0 : i32
    return %c0_i32, %c0_i32_0 : i32, i32
  }
  func.func @transform_5(%arg0: i32) -> (i32, i32) {
    %c0_i32 = arith.constant 0 : i32
    %c0_i32_0 = arith.constant 0 : i32
    %c0_i32_1 = arith.constant 0 : i32
    return %c0_i32, %c0_i32_0 : i32, i32
  }
  func.func @transform_6(%arg0: i32) -> (i32, i32) {
    %c0_i32 = arith.constant 0 : i32
    %c0_i32_0 = arith.constant 0 : i32
    %c0_i32_1 = arith.constant 0 : i32
    return %c0_i32, %c0_i32_0 : i32, i32
  }
  func.func @transform_7(%arg0: i32) -> (i32, i32) {
    %c0_i32 = arith.constant 0 : i32
    %c0_i32_0 = arith.constant 0 : i32
    return %c0_i32, %arg0 : i32, i32
  }
}

</mosaic_0001>

<llo_original>
// kernel: simple_nn_forward.1
$region0: #{simple_nn_forward.1}
  #allocation0 [shape = 'u32[]', space=smem, size = 0x4, offset = 0x4, fixed_abs, tag = 'smem constant byte address 0x4 - core index']
  #allocation1 [shape = 'u32[144,128]{1,0:T(1,128)}', space=vmem, size = 0x12000, scoped, tag = 'internal scratch']
  #allocation2 [shape = 'f32[1,1]{1,0:T(1,128)S(1)}', space=vmem, size = 0x200, scoped, tag = 'scoped memory for simple_nn_forward.1']
  %s0 = inlined_call_operand.vmem [shape: f32[1,128], index: 0, kind: input, shape index: {}]
  %s1 = inlined_call_operand.vmem [shape: f32[128,1], index: 1, kind: input, shape index: {}]
  %s2 = inlined_call_operand.vmem [shape: f32[128,1], index: 2, kind: input, shape index: {}]
  %s3 = inlined_call_operand.vmem [shape: f32[128,128], index: 3, kind: input, shape index: {}]
  %s4 = inlined_call_operand.vmem [shape: f32[128,1], index: 4, kind: input, shape index: {}]
  %s5 = inlined_call_operand.vmem [shape: f32[128,1], index: 5, kind: input, shape index: {}]
  %s6 = inlined_call_operand.<no memory space> [shape: f32[1,1], index: 6, kind: input, shape index: {}]
  %s7 = inlined_call_operand.vmem [shape: f32[1,128], index: 7, kind: output, shape index: {}]
  %s8 = sld [smem:[#allocation0]]
  $region38: #{simple_nn_forward.1} parent=0
    _
  %s10 = ssub.s32 1, %s8
  %s11 = scalar_select 0, %s10, %s8
  %v12 = vstv %s6
  %13 = vst [vmem:[#allocation2] sm:$0x1] %v12
  // Predicated region
  $region2: #{simple_nn_forward.1} parent=0 // pred_check
    _
  $region3: #{simple_nn_forward.1} parent=0 // pred_check_branch
    %15 = sbr.rel (0) target = $region5
  $region4: #{simple_nn_forward.1} parent=0 // pred_region
    _
  $region5: #{simple_nn_forward.1} parent=0 // pred_fallthru
    _
  // Predicated region
  $region6: #{simple_nn_forward.1} parent=0 // pred_check
    _
  $region7: #{simple_nn_forward.1} parent=0 // pred_check_branch
    %17 = sbr.rel (0) target = $region9
  $region8: #{simple_nn_forward.1} parent=0 // pred_region
    _
  $region9: #{simple_nn_forward.1} parent=0 // pred_fallthru
    _
  // Predicated region
  $region10: #{simple_nn_forward.1} parent=0 // pred_check
    _
  $region11: #{simple_nn_forward.1} parent=0 // pred_check_branch
    %19 = sbr.rel (0) target = $region13
  $region12: #{simple_nn_forward.1} parent=0 // pred_region
    _
  $region13: #{simple_nn_forward.1} parent=0 // pred_fallthru
    _
  // Predicated region
  $region14: #{simple_nn_forward.1} parent=0 // pred_check
    _
  $region15: #{simple_nn_forward.1} parent=0 // pred_check_branch
    %21 = sbr.rel (0) target = $region17
  $region16: #{simple_nn_forward.1} parent=0 // pred_region
    _
  $region17: #{simple_nn_forward.1} parent=0 // pred_fallthru
    _
  // Predicated region
  $region18: #{simple_nn_forward.1} parent=0 // pred_check
    _
  $region19: #{simple_nn_forward.1} parent=0 // pred_check_branch
    %23 = sbr.rel (0) target = $region21
  $region20: #{simple_nn_forward.1} parent=0 // pred_region
    _
  $region21: #{simple_nn_forward.1} parent=0 // pred_fallthru
    _
  // Predicated region
  $region22: #{simple_nn_forward.1} parent=0 // pred_check
    _
  $region23: #{simple_nn_forward.1} parent=0 // pred_check_branch
    %25 = sbr.rel (0) target = $region25
  $region24: #{simple_nn_forward.1} parent=0 // pred_region
    _
  $region25: #{simple_nn_forward.1} parent=0 // pred_fallthru
    _
  // Predicated region
  $region26: #{simple_nn_forward.1} parent=0 // pred_check
    _
  $region27: #{simple_nn_forward.1} parent=0 // pred_check_branch
    %27 = sbr.rel (0) target = $region29
  $region28: #{simple_nn_forward.1} parent=0 // pred_region
    _
  $region29: #{simple_nn_forward.1} parent=0 // pred_fallthru
    _
  %v28 = vld [vmem:[%s0] sm:$0x1]
  %v29 = vld [vmem:[%s1] sm:$0xff]
  %v30 = vld [vmem:[%s1 + $0x8] sm:$0xff]
  %v31 = vld [vmem:[%s1 + $0x10] sm:$0xff]
  %v32 = vld [vmem:[%s1 + $0x18] sm:$0xff]
  %v33 = vld [vmem:[%s1 + $0x20] sm:$0xff]
  %v34 = vld [vmem:[%s1 + $0x28] sm:$0xff]
  %v35 = vld [vmem:[%s1 + $0x30] sm:$0xff]
  %v36 = vld [vmem:[%s1 + $0x38] sm:$0xff]
  %v37 = vld [vmem:[%s1 + $0x40] sm:$0xff]
  %v38 = vld [vmem:[%s1 + $0x48] sm:$0xff]
  %v39 = vld [vmem:[%s1 + $0x50] sm:$0xff]
  %v40 = vld [vmem:[%s1 + $0x58] sm:$0xff]
  %v41 = vld [vmem:[%s1 + $0x60] sm:$0xff]
  %v42 = vld [vmem:[%s1 + $0x68] sm:$0xff]
  %v43 = vld [vmem:[%s1 + $0x70] sm:$0xff]
  %v44 = vld [vmem:[%s1 + $0x78] sm:$0xff]
  %46 = vset.pattern.permute.xlu0 0
  %47 = vperm.xlu0 %46, %v29
  %v48 = vpop.permute.xlu0 %47
  %51 = vset.pattern.permute.xlu0 0
  %52 = vperm.xlu0 %51, %v30
  %v53 = vpop.permute.xlu0 %52
  %56 = vset.pattern.permute.xlu0 0
  %57 = vperm.xlu0 %56, %v31
  %v58 = vpop.permute.xlu0 %57
  %61 = vset.pattern.permute.xlu0 0
  %62 = vperm.xlu0 %61, %v32
  %v63 = vpop.permute.xlu0 %62
  %66 = vset.pattern.permute.xlu0 0
  %67 = vperm.xlu0 %66, %v33
  %v68 = vpop.permute.xlu0 %67
  %71 = vset.pattern.permute.xlu0 0
  %72 = vperm.xlu0 %71, %v34
  %v73 = vpop.permute.xlu0 %72
  %76 = vset.pattern.permute.xlu0 0
  %77 = vperm.xlu0 %76, %v35
  %v78 = vpop.permute.xlu0 %77
  %81 = vset.pattern.permute.xlu0 0
  %82 = vperm.xlu0 %81, %v36
  %v83 = vpop.permute.xlu0 %82
  %86 = vset.pattern.permute.xlu0 0
  %87 = vperm.xlu0 %86, %v37
  %v88 = vpop.permute.xlu0 %87
  %91 = vset.pattern.permute.xlu0 0
  %92 = vperm.xlu0 %91, %v38
  %v93 = vpop.permute.xlu0 %92
  %96 = vset.pattern.permute.xlu0 0
  %97 = vperm.xlu0 %96, %v39
  %v98 = vpop.permute.xlu0 %97
  %101 = vset.pattern.permute.xlu0 0
  %102 = vperm.xlu0 %101, %v40
  %v103 = vpop.permute.xlu0 %102
  %106 = vset.pattern.permute.xlu0 0
  %107 = vperm.xlu0 %106, %v41
  %v108 = vpop.permute.xlu0 %107
  %111 = vset.pattern.permute.xlu0 0
  %112 = vperm.xlu0 %111, %v42
  %v113 = vpop.permute.xlu0 %112
  %116 = vset.pattern.permute.xlu0 0
  %117 = vperm.xlu0 %116, %v43
  %v118 = vpop.permute.xlu0 %117
  %121 = vset.pattern.permute.xlu0 0
  %122 = vperm.xlu0 %121, %v44
  %v123 = vpop.permute.xlu0 %122
  %v126 = vlaneseq
  %v127 = vshrl.u32 %v126, 7
  %v128 = vsub.s32 0, %v127
  %v129 = vrot.slane %v28, %v128
  %v131 = vmul.f32 %v48, %v129
  %v132 = vmul.f32 %v53, %v129
  %v133 = vmul.f32 %v58, %v129
  %v134 = vmul.f32 %v63, %v129
  %v135 = vmul.f32 %v68, %v129
  %v136 = vmul.f32 %v73, %v129
  %v137 = vmul.f32 %v78, %v129
  %v138 = vmul.f32 %v83, %v129
  %v139 = vmul.f32 %v88, %v129
  %v140 = vmul.f32 %v93, %v129
  %v141 = vmul.f32 %v98, %v129
  %v142 = vmul.f32 %v103, %v129
  %v143 = vmul.f32 %v108, %v129
  %v144 = vmul.f32 %v113, %v129
  %v145 = vmul.f32 %v118, %v129
  %v146 = vmul.f32 %v123, %v129
  %v147 = vld [vmem:[%s2] sm:$0xff]
  %v148 = vld [vmem:[%s2 + $0x8] sm:$0xff]
  %v149 = vld [vmem:[%s2 + $0x10] sm:$0xff]
  %v150 = vld [vmem:[%s2 + $0x18] sm:$0xff]
  %v151 = vld [vmem:[%s2 + $0x20] sm:$0xff]
  %v152 = vld [vmem:[%s2 + $0x28] sm:$0xff]
  %v153 = vld [vmem:[%s2 + $0x30] sm:$0xff]
  %v154 = vld [vmem:[%s2 + $0x38] sm:$0xff]
  %v155 = vld [vmem:[%s2 + $0x40] sm:$0xff]
  %v156 = vld [vmem:[%s2 + $0x48] sm:$0xff]
  %v157 = vld [vmem:[%s2 + $0x50] sm:$0xff]
  %v158 = vld [vmem:[%s2 + $0x58] sm:$0xff]
  %v159 = vld [vmem:[%s2 + $0x60] sm:$0xff]
  %v160 = vld [vmem:[%s2 + $0x68] sm:$0xff]
  %v161 = vld [vmem:[%s2 + $0x70] sm:$0xff]
  %v162 = vld [vmem:[%s2 + $0x78] sm:$0xff]
  %164 = vset.pattern.permute.xlu0 0
  %165 = vperm.xlu0 %164, %v147
  %v166 = vpop.permute.xlu0 %165
  %169 = vset.pattern.permute.xlu0 0
  %170 = vperm.xlu0 %169, %v148
  %v171 = vpop.permute.xlu0 %170
  %174 = vset.pattern.permute.xlu0 0
  %175 = vperm.xlu0 %174, %v149
  %v176 = vpop.permute.xlu0 %175
  %179 = vset.pattern.permute.xlu0 0
  %180 = vperm.xlu0 %179, %v150
  %v181 = vpop.permute.xlu0 %180
  %184 = vset.pattern.permute.xlu0 0
  %185 = vperm.xlu0 %184, %v151
  %v186 = vpop.permute.xlu0 %185
  %189 = vset.pattern.permute.xlu0 0
  %190 = vperm.xlu0 %189, %v152
  %v191 = vpop.permute.xlu0 %190
  %194 = vset.pattern.permute.xlu0 0
  %195 = vperm.xlu0 %194, %v153
  %v196 = vpop.permute.xlu0 %195
  %199 = vset.pattern.permute.xlu0 0
  %200 = vperm.xlu0 %199, %v154
  %v201 = vpop.permute.xlu0 %200
  %204 = vset.pattern.permute.xlu0 0
  %205 = vperm.xlu0 %204, %v155
  %v206 = vpop.permute.xlu0 %205
  %209 = vset.pattern.permute.xlu0 0
  %210 = vperm.xlu0 %209, %v156
  %v211 = vpop.permute.xlu0 %210
  %214 = vset.pattern.permute.xlu0 0
  %215 = vperm.xlu0 %214, %v157
  %v216 = vpop.permute.xlu0 %215
  %219 = vset.pattern.permute.xlu0 0
  %220 = vperm.xlu0 %219, %v158
  %v221 = vpop.permute.xlu0 %220
  %224 = vset.pattern.permute.xlu0 0
  %225 = vperm.xlu0 %224, %v159
  %v226 = vpop.permute.xlu0 %225
  %229 = vset.pattern.permute.xlu0 0
  %230 = vperm.xlu0 %229, %v160
  %v231 = vpop.permute.xlu0 %230
  %234 = vset.pattern.permute.xlu0 0
  %235 = vperm.xlu0 %234, %v161
  %v236 = vpop.permute.xlu0 %235
  %239 = vset.pattern.permute.xlu0 0
  %240 = vperm.xlu0 %239, %v162
  %v241 = vpop.permute.xlu0 %240
  %v243 = vadd.f32 %v131, %v166
  %v244 = vadd.f32 %v132, %v171
  %v245 = vadd.f32 %v133, %v176
  %v246 = vadd.f32 %v134, %v181
  %v247 = vadd.f32 %v135, %v186
  %v248 = vadd.f32 %v136, %v191
  %v249 = vadd.f32 %v137, %v196
  %v250 = vadd.f32 %v138, %v201
  %v251 = vadd.f32 %v139, %v206
  %v252 = vadd.f32 %v140, %v211
  %v253 = vadd.f32 %v141, %v216
  %v254 = vadd.f32 %v142, %v221
  %v255 = vadd.f32 %v143, %v226
  %v256 = vadd.f32 %v144, %v231
  %v257 = vadd.f32 %v145, %v236
  %v258 = vadd.f32 %v146, %v241
  %v259 = vmax.f32 %v243, 0.0
  %v260 = vmax.f32 %v244, 0.0
  %v261 = vmax.f32 %v245, 0.0
  %v262 = vmax.f32 %v246, 0.0
  %v263 = vmax.f32 %v247, 0.0
  %v264 = vmax.f32 %v248, 0.0
  %v265 = vmax.f32 %v249, 0.0
  %v266 = vmax.f32 %v250, 0.0
  %v267 = vmax.f32 %v251, 0.0
  %v268 = vmax.f32 %v252, 0.0
  %v269 = vmax.f32 %v253, 0.0
  %v270 = vmax.f32 %v254, 0.0
  %v271 = vmax.f32 %v255, 0.0
  %v272 = vmax.f32 %v256, 0.0
  %v273 = vmax.f32 %v257, 0.0
  %v274 = vmax.f32 %v258, 0.0
  %v275 = vld [vmem:[%s3] sm:$0xff]
  %v276 = vld [vmem:[%s3 + $0x8] sm:$0xff]
  %v277 = vld [vmem:[%s3 + $0x10] sm:$0xff]
  %v278 = vld [vmem:[%s3 + $0x18] sm:$0xff]
  %v279 = vld [vmem:[%s3 + $0x20] sm:$0xff]
  %v280 = vld [vmem:[%s3 + $0x28] sm:$0xff]
  %v281 = vld [vmem:[%s3 + $0x30] sm:$0xff]
  %v282 = vld [vmem:[%s3 + $0x38] sm:$0xff]
  %v283 = vld [vmem:[%s3 + $0x40] sm:$0xff]
  %v284 = vld [vmem:[%s3 + $0x48] sm:$0xff]
  %v285 = vld [vmem:[%s3 + $0x50] sm:$0xff]
  %v286 = vld [vmem:[%s3 + $0x58] sm:$0xff]
  %v287 = vld [vmem:[%s3 + $0x60] sm:$0xff]
  %v288 = vld [vmem:[%s3 + $0x68] sm:$0xff]
  %v289 = vld [vmem:[%s3 + $0x70] sm:$0xff]
  %v290 = vld [vmem:[%s3 + $0x78] sm:$0xff]
  %v291 = vld [vmem:[%s4] sm:$0xff]
  %v292 = vld [vmem:[%s4 + $0x8] sm:$0xff]
  %v293 = vld [vmem:[%s4 + $0x10] sm:$0xff]
  %v294 = vld [vmem:[%s4 + $0x18] sm:$0xff]
  %v295 = vld [vmem:[%s4 + $0x20] sm:$0xff]
  %v296 = vld [vmem:[%s4 + $0x28] sm:$0xff]
  %v297 = vld [vmem:[%s4 + $0x30] sm:$0xff]
  %v298 = vld [vmem:[%s4 + $0x38] sm:$0xff]
  %v299 = vld [vmem:[%s4 + $0x40] sm:$0xff]
  %v300 = vld [vmem:[%s4 + $0x48] sm:$0xff]
  %v301 = vld [vmem:[%s4 + $0x50] sm:$0xff]
  %v302 = vld [vmem:[%s4 + $0x58] sm:$0xff]
  %v303 = vld [vmem:[%s4 + $0x60] sm:$0xff]
  %v304 = vld [vmem:[%s4 + $0x68] sm:$0xff]
  %v305 = vld [vmem:[%s4 + $0x70] sm:$0xff]
  %v306 = vld [vmem:[%s4 + $0x78] sm:$0xff]
  %308 = vset.pattern.permute.xlu0 0
  %309 = vperm.xlu0 %308, %v291
  %v310 = vpop.permute.xlu0 %309
  %313 = vset.pattern.permute.xlu0 0
  %314 = vperm.xlu0 %313, %v292
  %v315 = vpop.permute.xlu0 %314
  %318 = vset.pattern.permute.xlu0 0
  %319 = vperm.xlu0 %318, %v293
  %v320 = vpop.permute.xlu0 %319
  %323 = vset.pattern.permute.xlu0 0
  %324 = vperm.xlu0 %323, %v294
  %v325 = vpop.permute.xlu0 %324
  %328 = vset.pattern.permute.xlu0 0
  %329 = vperm.xlu0 %328, %v295
  %v330 = vpop.permute.xlu0 %329
  %333 = vset.pattern.permute.xlu0 0
  %334 = vperm.xlu0 %333, %v296
  %v335 = vpop.permute.xlu0 %334
  %338 = vset.pattern.permute.xlu0 0
  %339 = vperm.xlu0 %338, %v297
  %v340 = vpop.permute.xlu0 %339
  %343 = vset.pattern.permute.xlu0 0
  %344 = vperm.xlu0 %343, %v298
  %v345 = vpop.permute.xlu0 %344
  %348 = vset.pattern.permute.xlu0 0
  %349 = vperm.xlu0 %348, %v299
  %v350 = vpop.permute.xlu0 %349
  %353 = vset.pattern.permute.xlu0 0
  %354 = vperm.xlu0 %353, %v300
  %v355 = vpop.permute.xlu0 %354
  %358 = vset.pattern.permute.xlu0 0
  %359 = vperm.xlu0 %358, %v301
  %v360 = vpop.permute.xlu0 %359
  %363 = vset.pattern.permute.xlu0 0
  %364 = vperm.xlu0 %363, %v302
  %v365 = vpop.permute.xlu0 %364
  %368 = vset.pattern.permute.xlu0 0
  %369 = vperm.xlu0 %368, %v303
  %v370 = vpop.permute.xlu0 %369
  %373 = vset.pattern.permute.xlu0 0
  %374 = vperm.xlu0 %373, %v304
  %v375 = vpop.permute.xlu0 %374
  %378 = vset.pattern.permute.xlu0 0
  %379 = vperm.xlu0 %378, %v305
  %v380 = vpop.permute.xlu0 %379
  %383 = vset.pattern.permute.xlu0 0
  %384 = vperm.xlu0 %383, %v306
  %v385 = vpop.permute.xlu0 %384
  %387 = vmatprep.subr.mxu0 0.0
  %388 = vmatpush1.msra.mxu0 %v274
  %389 = vmatprep.subr.mxu0 0.0
  %390 = vmatpush1.msra.mxu0 %v273
  %391 = vmatprep.subr.mxu0 0.0
  %392 = vmatpush1.msra.mxu0 %v272
  %393 = vmatprep.subr.mxu0 0.0
  %394 = vmatpush1.msra.mxu0 %v271
  %395 = vmatprep.subr.mxu0 0.0
  %396 = vmatpush1.msra.mxu0 %v270
  %397 = vmatprep.subr.mxu0 0.0
  %398 = vmatpush1.msra.mxu0 %v269
  %399 = vmatprep.subr.mxu0 0.0
  %400 = vmatpush1.msra.mxu0 %v268
  %401 = vmatprep.subr.mxu0 0.0
  %402 = vmatpush1.msra.mxu0 %v267
  %403 = vmatprep.subr.mxu0 0.0
  %404 = vmatpush1.msra.mxu0 %v266
  %405 = vmatprep.subr.mxu0 0.0
  %406 = vmatpush1.msra.mxu0 %v265
  %407 = vmatprep.subr.mxu0 0.0
  %408 = vmatpush1.msra.mxu0 %v264
  %409 = vmatprep.subr.mxu0 0.0
  %410 = vmatpush1.msra.mxu0 %v263
  %411 = vmatprep.subr.mxu0 0.0
  %412 = vmatpush1.msra.mxu0 %v262
  %413 = vmatprep.subr.mxu0 0.0
  %414 = vmatpush1.msra.mxu0 %v261
  %415 = vmatprep.subr.mxu0 0.0
  %416 = vmatpush1.msra.mxu0 %v260
  %417 = vmatprep.subr.mxu0 0.0
  %418 = vmatpush1.msra.mxu0 %v259
  %419 = vmatprep.subr.mxu0 0.0
  %420 = vmatpush2.msra.mxu0 0.0
  %421 = vmatprep.subr.mxu0 0.0
  %422 = vmatpush2.msra.mxu0 0.0
  %423 = vmatprep.subr.mxu0 0.0
  %424 = vmatpush2.msra.mxu0 0.0
  %425 = vmatprep.subr.mxu0 0.0
  %426 = vmatpush2.msra.mxu0 0.0
  %427 = vmatprep.subr.mxu0 0.0
  %428 = vmatpush2.msra.mxu0 0.0
  %429 = vmatprep.subr.mxu0 0.0
  %430 = vmatpush2.msra.mxu0 0.0
  %431 = vmatprep.subr.mxu0 0.0
  %432 = vmatpush2.msra.mxu0 0.0
  %433 = vmatprep.subr.mxu0 0.0
  %434 = vmatpush2.msra.mxu0 0.0
  %435 = vmatprep.subr.mxu0 0.0
  %436 = vmatpush2.msra.mxu0 0.0
  %437 = vmatprep.subr.mxu0 0.0
  %438 = vmatpush2.msra.mxu0 0.0
  %439 = vmatprep.subr.mxu0 0.0
  %440 = vmatpush2.msra.mxu0 0.0
  %441 = vmatprep.subr.mxu0 0.0
  %442 = vmatpush2.msra.mxu0 0.0
  %443 = vmatprep.subr.mxu0 0.0
  %444 = vmatpush2.msra.mxu0 0.0
  %445 = vmatprep.subr.mxu0 0.0
  %446 = vmatpush2.msra.mxu0 0.0
  %447 = vmatprep.subr.mxu0 0.0
  %448 = vmatpush2.msra.mxu0 0.0
  %449 = vmatprep.subr.mxu0 0.0
  %450 = vmatpush2.msra.mxu0 0.0
  %451 = vmatprep.mubr.f32.mxu0 0.0
  %452 = vmatmul.mubr.f32.gmra.mxu0 %v275
  %v453 = vpop.f32.mrf.mxu0
  %v454 = vadd.f32 %v310, %v453
  %v455 = vpop.f32.mrf.mxu0
  %456 = vmatprep.mubr.f32.mxu0 0.0
  %457 = vmatmul.mubr.f32.gmra.mxu0 %v276
  %v458 = vpop.f32.mrf.mxu0
  %v459 = vadd.f32 %v315, %v458
  %v460 = vpop.f32.mrf.mxu0
  %461 = vmatprep.mubr.f32.mxu0 0.0
  %462 = vmatmul.mubr.f32.gmra.mxu0 %v277
  %v463 = vpop.f32.mrf.mxu0
  %v464 = vadd.f32 %v320, %v463
  %v465 = vpop.f32.mrf.mxu0
  %466 = vmatprep.mubr.f32.mxu0 0.0
  %467 = vmatmul.mubr.f32.gmra.mxu0 %v278
  %v468 = vpop.f32.mrf.mxu0
  %v469 = vadd.f32 %v325, %v468
  %v470 = vpop.f32.mrf.mxu0
  %471 = vmatprep.mubr.f32.mxu0 0.0
  %472 = vmatmul.mubr.f32.gmra.mxu0 %v279
  %v473 = vpop.f32.mrf.mxu0
  %v474 = vadd.f32 %v330, %v473
  %v475 = vpop.f32.mrf.mxu0
  %476 = vmatprep.mubr.f32.mxu0 0.0
  %477 = vmatmul.mubr.f32.gmra.mxu0 %v280
  %v478 = vpop.f32.mrf.mxu0
  %v479 = vadd.f32 %v335, %v478
  %v480 = vpop.f32.mrf.mxu0
  %481 = vmatprep.mubr.f32.mxu0 0.0
  %482 = vmatmul.mubr.f32.gmra.mxu0 %v281
  %v483 = vpop.f32.mrf.mxu0
  %v484 = vadd.f32 %v340, %v483
  %v485 = vpop.f32.mrf.mxu0
  %486 = vmatprep.mubr.f32.mxu0 0.0
  %487 = vmatmul.mubr.f32.gmra.mxu0 %v282
  %v488 = vpop.f32.mrf.mxu0
  %v489 = vadd.f32 %v345, %v488
  %v490 = vpop.f32.mrf.mxu0
  %491 = vmatprep.mubr.f32.mxu0 0.0
  %492 = vmatmul.mubr.f32.gmra.mxu0 %v283
  %v493 = vpop.f32.mrf.mxu0
  %v494 = vadd.f32 %v350, %v493
  %v495 = vpop.f32.mrf.mxu0
  %496 = vmatprep.mubr.f32.mxu0 0.0
  %497 = vmatmul.mubr.f32.gmra.mxu0 %v284
  %v498 = vpop.f32.mrf.mxu0
  %v499 = vadd.f32 %v355, %v498
  %v500 = vpop.f32.mrf.mxu0
  %501 = vmatprep.mubr.f32.mxu0 0.0
  %502 = vmatmul.mubr.f32.gmra.mxu0 %v285
  %v503 = vpop.f32.mrf.mxu0
  %v504 = vadd.f32 %v360, %v503
  %v505 = vpop.f32.mrf.mxu0
  %506 = vmatprep.mubr.f32.mxu0 0.0
  %507 = vmatmul.mubr.f32.gmra.mxu0 %v286
  %v508 = vpop.f32.mrf.mxu0
  %v509 = vadd.f32 %v365, %v508
  %v510 = vpop.f32.mrf.mxu0
  %511 = vmatprep.mubr.f32.mxu0 0.0
  %512 = vmatmul.mubr.f32.gmra.mxu0 %v287
  %v513 = vpop.f32.mrf.mxu0
  %v514 = vadd.f32 %v370, %v513
  %v515 = vpop.f32.mrf.mxu0
  %516 = vmatprep.mubr.f32.mxu0 0.0
  %517 = vmatmul.mubr.f32.gmra.mxu0 %v288
  %v518 = vpop.f32.mrf.mxu0
  %v519 = vadd.f32 %v375, %v518
  %v520 = vpop.f32.mrf.mxu0
  %521 = vmatprep.mubr.f32.mxu0 0.0
  %522 = vmatmul.mubr.f32.gmra.mxu0 %v289
  %v523 = vpop.f32.mrf.mxu0
  %v524 = vadd.f32 %v380, %v523
  %v525 = vpop.f32.mrf.mxu0
  %526 = vmatprep.mubr.f32.mxu0 0.0
  %527 = vmatmul.mubr.f32.gmra.mxu0 %v290
  %v528 = vpop.f32.mrf.mxu0
  %v529 = vadd.f32 %v385, %v528
  %v530 = vpop.f32.mrf.mxu0
  %531 = vdwg.mxu0
  %v532 = vmax.f32 %v454, 0.0
  %v533 = vmax.f32 %v459, 0.0
  %v534 = vmax.f32 %v464, 0.0
  %v535 = vmax.f32 %v469, 0.0
  %v536 = vmax.f32 %v474, 0.0
  %v537 = vmax.f32 %v479, 0.0
  %v538 = vmax.f32 %v484, 0.0
  %v539 = vmax.f32 %v489, 0.0
  %v540 = vmax.f32 %v494, 0.0
  %v541 = vmax.f32 %v499, 0.0
  %v542 = vmax.f32 %v504, 0.0
  %v543 = vmax.f32 %v509, 0.0
  %v544 = vmax.f32 %v514, 0.0
  %v545 = vmax.f32 %v519, 0.0
  %v546 = vmax.f32 %v524, 0.0
  %v547 = vmax.f32 %v529, 0.0
  %v548 = vld [vmem:[%s5] sm:$0xff]
  %v549 = vld [vmem:[%s5 + $0x8] sm:$0xff]
  %v550 = vld [vmem:[%s5 + $0x10] sm:$0xff]
  %v551 = vld [vmem:[%s5 + $0x18] sm:$0xff]
  %v552 = vld [vmem:[%s5 + $0x20] sm:$0xff]
  %v553 = vld [vmem:[%s5 + $0x28] sm:$0xff]
  %v554 = vld [vmem:[%s5 + $0x30] sm:$0xff]
  %v555 = vld [vmem:[%s5 + $0x38] sm:$0xff]
  %v556 = vld [vmem:[%s5 + $0x40] sm:$0xff]
  %v557 = vld [vmem:[%s5 + $0x48] sm:$0xff]
  %v558 = vld [vmem:[%s5 + $0x50] sm:$0xff]
  %v559 = vld [vmem:[%s5 + $0x58] sm:$0xff]
  %v560 = vld [vmem:[%s5 + $0x60] sm:$0xff]
  %v561 = vld [vmem:[%s5 + $0x68] sm:$0xff]
  %v562 = vld [vmem:[%s5 + $0x70] sm:$0xff]
  %v563 = vld [vmem:[%s5 + $0x78] sm:$0xff]
  %565 = vset.pattern.permute.xlu0 0
  %566 = vperm.xlu0 %565, %v548
  %v567 = vpop.permute.xlu0 %566
  %570 = vset.pattern.permute.xlu0 0
  %571 = vperm.xlu0 %570, %v549
  %v572 = vpop.permute.xlu0 %571
  %575 = vset.pattern.permute.xlu0 0
  %576 = vperm.xlu0 %575, %v550
  %v577 = vpop.permute.xlu0 %576
  %580 = vset.pattern.permute.xlu0 0
  %581 = vperm.xlu0 %580, %v551
  %v582 = vpop.permute.xlu0 %581
  %585 = vset.pattern.permute.xlu0 0
  %586 = vperm.xlu0 %585, %v552
  %v587 = vpop.permute.xlu0 %586
  %590 = vset.pattern.permute.xlu0 0
  %591 = vperm.xlu0 %590, %v553
  %v592 = vpop.permute.xlu0 %591
  %595 = vset.pattern.permute.xlu0 0
  %596 = vperm.xlu0 %595, %v554
  %v597 = vpop.permute.xlu0 %596
  %600 = vset.pattern.permute.xlu0 0
  %601 = vperm.xlu0 %600, %v555
  %v602 = vpop.permute.xlu0 %601
  %605 = vset.pattern.permute.xlu0 0
  %606 = vperm.xlu0 %605, %v556
  %v607 = vpop.permute.xlu0 %606
  %610 = vset.pattern.permute.xlu0 0
  %611 = vperm.xlu0 %610, %v557
  %v612 = vpop.permute.xlu0 %611
  %615 = vset.pattern.permute.xlu0 0
  %616 = vperm.xlu0 %615, %v558
  %v617 = vpop.permute.xlu0 %616
  %620 = vset.pattern.permute.xlu0 0
  %621 = vperm.xlu0 %620, %v559
  %v622 = vpop.permute.xlu0 %621
  %625 = vset.pattern.permute.xlu0 0
  %626 = vperm.xlu0 %625, %v560
  %v627 = vpop.permute.xlu0 %626
  %630 = vset.pattern.permute.xlu0 0
  %631 = vperm.xlu0 %630, %v561
  %v632 = vpop.permute.xlu0 %631
  %635 = vset.pattern.permute.xlu0 0
  %636 = vperm.xlu0 %635, %v562
  %v637 = vpop.permute.xlu0 %636
  %640 = vset.pattern.permute.xlu0 0
  %641 = vperm.xlu0 %640, %v563
  %v642 = vpop.permute.xlu0 %641
  %v644 = vmul.f32 %v567, %v532
  %v645 = vmul.f32 %v572, %v533
  %v646 = vmul.f32 %v577, %v534
  %v647 = vmul.f32 %v582, %v535
  %v648 = vmul.f32 %v587, %v536
  %v649 = vmul.f32 %v592, %v537
  %v650 = vmul.f32 %v597, %v538
  %v651 = vmul.f32 %v602, %v539
  %v652 = vmul.f32 %v607, %v540
  %v653 = vmul.f32 %v612, %v541
  %v654 = vmul.f32 %v617, %v542
  %v655 = vmul.f32 %v622, %v543
  %v656 = vmul.f32 %v627, %v544
  %v657 = vmul.f32 %v632, %v545
  %v658 = vmul.f32 %v637, %v546
  %v659 = vmul.f32 %v642, %v547
  %v660 = vadd.f32 %v644, %v645
  %v661 = vadd.f32 %v660, %v646
  %v662 = vadd.f32 %v661, %v647
  %v663 = vadd.f32 %v662, %v648
  %v664 = vadd.f32 %v663, %v649
  %v665 = vadd.f32 %v664, %v650
  %v666 = vadd.f32 %v665, %v651
  %v667 = vadd.f32 %v666, %v652
  %v668 = vadd.f32 %v667, %v653
  %v669 = vadd.f32 %v668, %v654
  %v670 = vadd.f32 %v669, %v655
  %v671 = vadd.f32 %v670, %v656
  %v672 = vadd.f32 %v671, %v657
  %v673 = vadd.f32 %v672, %v658
  %v674 = vadd.f32 %v673, %v659
  %v675 = vrot.slane %v674, 4
  %v676 = vadd.f32 %v674, %v675
  %v677 = vrot.slane %v676, 2
  %v678 = vadd.f32 %v676, %v677
  %v679 = vrot.slane %v678, 1
  %v680 = vadd.f32 %v678, %v679
  %v681 = vld [vmem:[#allocation2] sm:$0x1]
  %683 = vset.pattern.permute.xlu0 0
  %684 = vperm.xlu0 %683, %v681
  %v685 = vpop.permute.xlu0 %684
  %v687 = vlaneseq
  %v688 = vshrl.u32 %v687, 7
  %v689 = vsub.s32 0, %v688
  %v690 = vrot.slane %v685, %v689
  %v691 = vadd.f32 %v680, %v690
  %692 = vst [vmem:[%s7] sm:$0x1] %v691
  // Predicated region
  $region30: #{simple_nn_forward.1} parent=0 // pred_check
    _
  $region31: #{simple_nn_forward.1} parent=0 // pred_check_branch
    %694 = sbr.rel (0) target = $region33
  $region32: #{simple_nn_forward.1} parent=0 // pred_region
    _
  $region33: #{simple_nn_forward.1} parent=0 // pred_fallthru
    _
  // Predicated region
  $region34: #{simple_nn_forward.1} parent=0 // pred_check
    _
  $region35: #{simple_nn_forward.1} parent=0 // pred_check_branch
    %696 = sbr.rel (0) target = $region37
  $region36: #{simple_nn_forward.1} parent=0 // pred_region
    _
  $region37: #{simple_nn_forward.1} parent=0 // pred_fallthru
    _

</llo_original>
